<compile_context>
chip_gen: v5e
topology: v5e:2x2
jax: 0.10.0
libtpu: 0.0.40
codegen_flags: <defaults>
</compile_context>

<pallas_src>
import functools

import jax
import jax.numpy as jnp
from jax.experimental import pallas as pl
from jax.experimental.pallas import tpu as pltpu

LANE = 128
_MIB = 1024 * 1024


def _round_up(n, m):
    return ((n + m - 1) // m) * m


def _pad2d(a, rows, cols):
    pr, pc = rows - a.shape[0], cols - a.shape[1]
    if pr == 0 and pc == 0:
        return a
    return jnp.pad(a, ((0, pr), (0, pc)))


def _vmem_cap_bytes():
    """Generation-aware usable VMEM cap: physical capacity minus headroom."""
    try:
        cap = int(pltpu.get_tpu_info().vmem_capacity_bytes)
        # ~15% headroom for compiler internal scratch / pipeline metadata:
        # 128 MiB (v5e/v6e) -> ~108 MiB, 64 MiB (v7x) -> ~54 MiB.
        return max(32 * _MIB, int(cap * 0.85))
    except Exception:
        return 48 * _MIB  # conservative fallback if the query is unavailable


# ----------------------------------------------------------------------------
# Parameter preparation (done ONCE, not per forward call)
# ----------------------------------------------------------------------------
def prepare_params(weights, biases, last_layer, *, compute_dtype=jnp.bfloat16):
    """Pad every feature dim to a multiple of 128 lanes and cast weights to the
    MXU compute dtype once, so mlp_forward does no per-call pad/convert."""
    input_dim = weights[0].shape[0]
    output_dim = last_layer.shape[1]
    dims = [_round_up(input_dim, LANE)] + [_round_up(w.shape[1], LANE)
                                           for w in weights]
    out_p = _round_up(output_dim, LANE)

    w_list, b_list = [], []
    for li, (w, b) in enumerate(zip(weights, biases)):
        w_list.append(_pad2d(w, dims[li], dims[li + 1]).astype(compute_dtype))
        b_list.append(
            _pad2d(b.reshape(1, -1), 1, dims[li + 1]).astype(jnp.float32))
    last_p = _pad2d(last_layer, dims[-1], out_p).astype(compute_dtype)

    return dict(weights=w_list, biases=b_list, last=last_p, dims=dims,
                input_dim=input_dim, output_dim=output_dim, out_p=out_p,
                compute_dtype=compute_dtype)


# ----------------------------------------------------------------------------
# Fused kernel: all weights VMEM-resident, batch streamed
# ----------------------------------------------------------------------------
def _mlp_fused_kernel(num_hidden_layers, *refs):
    # refs = (x_ref, w0, b0, ..., w_{L-1}, b_{L-1}, w_last, out_ref)
    x_ref = refs[0]
    out_ref = refs[-1]
    w_last_ref = refs[-2]
    layer_refs = refs[1:-2]

    h = x_ref[...]                            # bf16 batch tile (TB, in_p)
    for i in range(num_hidden_layers):
        w = layer_refs[2 * i][...]            # bf16 weight, VMEM-resident
        b = layer_refs[2 * i + 1][...]        # f32 bias (1, out_dim)
        acc = jnp.dot(h, w, preferred_element_type=jnp.float32)   # MXU, f32 acc
        acc = jnp.maximum(acc + b, 0.0)       # f32 epilogue (v5e-safe)
        h = acc.astype(w.dtype)               # bf16 operand for next MXU pass
        # TODO(synk): the torch module also stashes (x > 0) masks in
        # self.activations; that side-effect list is not part of the returned
        # tensor, so it is not produced here.
    out = jnp.dot(h, w_last_ref[...], preferred_element_type=jnp.float32)
    out_ref[...] = out.astype(out_ref.dtype)


# ----------------------------------------------------------------------------
# Streaming fallback: per-layer K/N-tiled matmul (+ optional bias/ReLU)
# ----------------------------------------------------------------------------
def _linear_kernel(apply_relu, x_ref, w_ref, b_ref, o_ref, acc_ref):
    @pl.when(pl.program_id(2) == 0)
    def _():
        acc_ref[...] = jnp.zeros_like(acc_ref)

    acc_ref[...] += jnp.dot(x_ref[...], w_ref[...],
                            preferred_element_type=jnp.float32)

    @pl.when(pl.program_id(2) == pl.num_programs(2) - 1)
    def _():
        r = acc_ref[...] + b_ref[...]
        if apply_relu:
            r = jnp.maximum(r, 0.0)
        o_ref[...] = r.astype(o_ref.dtype)


def _pick_tile(dim, prefs):
    for t in prefs:
        if dim % t == 0:
            return t
    return dim


def _tiled_linear(x, w, b2d, out_dtype, apply_relu, *, vmem_limit):
    M, K = x.shape
    N = w.shape[1]
    tm = _pick_tile(M, (256, 128, 64, 32, 16, 8))
    tk = _pick_tile(K, (512, 256, 128))
    tn = _pick_tile(N, (512, 256, 128))
    grid = (M // tm, N // tn, K // tk)
    return pl.pallas_call(
        functools.partial(_linear_kernel, apply_relu),
        grid=grid,
        in_specs=[pl.BlockSpec((tm, tk), lambda i, j, k: (i, k)),
                  pl.BlockSpec((tk, tn), lambda i, j, k: (k, j)),
                  pl.BlockSpec((1, tn), lambda i, j, k: (0, j))],
        out_specs=pl.BlockSpec((tm, tn), lambda i, j, k: (i, j)),
        out_shape=jax.ShapeDtypeStruct((M, N), out_dtype),
        scratch_shapes=[pltpu.VMEM((tm, tn), jnp.float32)],
        compiler_params=pltpu.CompilerParams(
            dimension_semantics=("parallel", "parallel", "arbitrary"),
            vmem_limit_bytes=int(vmem_limit)),
    )(x, w, b2d)


# ----------------------------------------------------------------------------
# Forward wrapper
# ----------------------------------------------------------------------------
def mlp_forward(x, params, *, batch_tile=512, force_streaming=False):
    """MLP forward. `params` comes from prepare_params (padded/cast once)."""
    compute_dtype = params["compute_dtype"]
    w_list, b_list, last_p = params["weights"], params["biases"], params["last"]
    dims, out_p = params["dims"], params["out_p"]
    output_dim = params["output_dim"]
    num_hidden_layers = len(w_list)
    in_p = dims[0]

    B = x.shape[0]
    out_dtype = x.dtype

    # ---- batch tile: multiple of 16 (bf16 sublane packing); at least 2 grid
    # tiles whenever the batch allows so both v7x TensorCores get work. -------
    b16 = _round_up(B, 16)
    if b16 >= 32:
        tb = min(batch_tile, _round_up(pl.cdiv(b16, 2), 16))
    else:
        tb = b16
    b_pad = _round_up(b16, tb)
    grid = (b_pad // tb,)

    x_p = _pad2d(x, b_pad, in_p).astype(compute_dtype)

    # ---- VMEM accounting: streamed blocks x2 buffers, resident params x1 ----
    cd_sz = jnp.dtype(compute_dtype).itemsize
    out_sz = jnp.dtype(out_dtype).itemsize
    resident = sum(int(a.size) * a.dtype.itemsize
                   for a in (w_list + b_list + [last_p]))
    streamed = 2 * tb * in_p * cd_sz + 2 * tb * out_p * out_sz
    max_feat = max(dims + [out_p])
    scratch = tb * max_feat * (4 + cd_sz)       # f32 acc + bf16 activation
    est = resident + streamed + scratch

    vmem_cap = _vmem_cap_bytes()
    vmem_limit = int(min(max(int(est * 1.25), 32 * _MIB), vmem_cap))

    if force_streaming or est > vmem_cap:
        # Resident weights would overflow this generation's VMEM budget
        # (e.g. hidden >= 4096 with 2+ layers on v7x's 64 MiB): stream weights
        # per layer with the standard double-buffered BlockSpec pipeline.
        # TODO(synk): fuse the per-layer calls with pltpu.emit_pipeline to keep
        # inter-layer activations out of HBM.
        h = x_p
        for li in range(num_hidden_layers):
            h = _tiled_linear(h, w_list[li], b_list[li], compute_dtype, True,
                              vmem_limit=vmem_cap)
        zero_b = jnp.zeros((1, out_p), jnp.float32)
        out_padded = _tiled_linear(h, last_p, zero_b, out_dtype, False,
                                   vmem_limit=vmem_cap)
        return out_padded[:B, :output_dim]

    # ---- fused resident-weight path -----------------------------------------
    resident_mode = pl.Buffered(1)   # constant index map -> single VMEM buffer
    inputs = [x_p]
    in_specs = [pl.BlockSpec((tb, in_p), lambda i: (i, 0))]   # streamed, 2-deep
    for li in range(num_hidden_layers):
        w_p, b2d = w_list[li], b_list[li]
        inputs.extend([w_p, b2d])
        in_specs.append(pl.BlockSpec(w_p.shape, lambda i: (0, 0),
                                     pipeline_mode=resident_mode))
        in_specs.append(pl.BlockSpec(b2d.shape, lambda i: (0, 0),
                                     pipeline_mode=resident_mode))
    inputs.append(last_p)
    in_specs.append(pl.BlockSpec(last_p.shape, lambda i: (0, 0),
                                 pipeline_mode=resident_mode))

    out_shape = jax.ShapeDtypeStruct((b_pad, out_p), out_dtype)
    out_spec = pl.BlockSpec((tb, out_p), lambda i: (i, 0))

    kernel = functools.partial(_mlp_fused_kernel, num_hidden_layers)
    out_padded = pl.pallas_call(
        kernel,
        grid=grid,
        in_specs=in_specs,
        out_specs=out_spec,
        out_shape=out_shape,
        compiler_params=pltpu.CompilerParams(
            dimension_semantics=("parallel",),   # shard batch tiles across TCs
            vmem_limit_bytes=vmem_limit),
    )(*inputs)
    return out_padded[:B, :output_dim]


# ----------------------------------------------------------------------------
# Init + references
# ----------------------------------------------------------------------------
def init_params(key, input_dim, hidden_dim, output_dim, num_hidden_layers):
    """Deterministic parameter init mimicking the torch module's shapes."""
    dims = [input_dim] + [hidden_dim] * num_hidden_layers
    weights, biases = [], []
    for i in range(num_hidden_layers):
        key, kw, kb = jax.random.split(key, 3)
        fan_in, fan_out = dims[i], dims[i + 1]
        bound = 1.0 / jnp.sqrt(fan_in)
        # stored as (in, out) = torch Linear weight transposed
        weights.append(
            jax.random.uniform(kw, (fan_in, fan_out), jnp.float32, -bound, bound))
        biases.append(
            jax.random.uniform(kb, (fan_out,), jnp.float32, -bound, bound))
    key, kl = jax.random.split(key)
    last_layer = jax.random.normal(kl, (hidden_dim, output_dim), jnp.float32)
    return weights, biases, last_layer


def mlp_reference_f32(x, weights, biases, last_layer):
    """Pure-JAX f32 reference identical to the torch forward."""
    for w, b in zip(weights, biases):
        x = jnp.maximum(x @ w + b, 0.0)
    return x @ last_layer


def mlp_reference_mixed(x, weights, biases, last_layer,
                        compute_dtype=jnp.bfloat16):
    """Pure-JAX reference mirroring the kernel's bf16-operand / f32-accum math."""
    h = x.astype(compute_dtype)
    for w, b in zip(weights, biases):
        acc = jnp.dot(h, w.astype(compute_dtype),
                      preferred_element_type=jnp.float32)
        acc = jnp.maximum(acc + b.astype(jnp.float32), 0.0)
        h = acc.astype(compute_dtype)
    out = jnp.dot(h, last_layer.astype(compute_dtype),
                  preferred_element_type=jnp.float32)
    return out.astype(x.dtype)


if __name__ == "__main__":
    # Small shapes consistent with the module's forward.  At these toy sizes
    # the kernel is launch-overhead dominated; the tiling/dtype choices above
    # pay off at production shapes (B in the hundreds, hidden >= 512).
    batch = 8
    input_dim = 4
    hidden_dim = 32
    output_dim = 4
    num_hidden_layers = 2

    key = jax.random.PRNGKey(0)
    key, kx = jax.random.split(key)
    x = jax.random.normal(kx, (batch, input_dim), jnp.float32)

    weights, biases, last_layer = init_params(
        key, input_dim, hidden_dim, output_dim, num_hidden_layers)
    params = prepare_params(weights, biases, last_layer)   # pad/cast ONCE

    # fused resident-weight path
    out = jax.block_until_ready(mlp_forward(x, params))
    # streaming fallback path (exercised here to verify correctness)
    out_stream = jax.block_until_ready(
        mlp_forward(x, params, force_streaming=True))

    ref_mixed = mlp_reference_mixed(x, weights, biases, last_layer)
    ref_f32 = mlp_reference_f32(x, weights, biases, last_layer)

    assert out.shape == (batch, output_dim)
    assert jnp.allclose(out, ref_mixed, atol=1e-2, rtol=1e-2), \
        "fused path mismatch vs bf16-mirrored reference"
    assert jnp.allclose(out_stream, ref_mixed, atol=1e-2, rtol=1e-2), \
        "streaming path mismatch vs bf16-mirrored reference"
    assert jnp.allclose(out, ref_f32, atol=1e-1, rtol=1e-1), \
        "mismatch vs f32 reference"

    print("KERNEL_OK")
</pallas_src>

<mosaic_0001>
module attributes {stable_mosaic.version = 11 : i64} {
  func.func @_mlp_fused_kernel(%arg0: i32, %arg1: memref<16x128xbf16, #tpu.memory_space<vmem>>, %arg2: memref<128x128xbf16, #tpu.memory_space<vmem>>, %arg3: memref<1x128xf32, #tpu.memory_space<vmem>>, %arg4: memref<128x128xbf16, #tpu.memory_space<vmem>>, %arg5: memref<1x128xf32, #tpu.memory_space<vmem>>, %arg6: memref<128x128xbf16, #tpu.memory_space<vmem>>, %arg7: memref<16x128xf32, #tpu.memory_space<vmem>>) attributes {dimension_semantics = [#tpu.dimension_semantics<parallel>], iteration_bounds = array<i64: 1>, scalar_prefetch = 0 : i64, scratch_operands = 0 : i64, tpu.core_type = #tpu.core_type<tc>, window_params = [{transform_indices = @transform_0, window_bounds = array<i64: 16, 128>}, {pipeline_mode = #tpu.pipeline_mode<synchronous>, transform_indices = @transform_1, window_bounds = array<i64: 128, 128>}, {pipeline_mode = #tpu.pipeline_mode<synchronous>, transform_indices = @transform_2, window_bounds = array<i64: 1, 128>}, {pipeline_mode = #tpu.pipeline_mode<synchronous>, transform_indices = @transform_3, window_bounds = array<i64: 128, 128>}, {pipeline_mode = #tpu.pipeline_mode<synchronous>, transform_indices = @transform_4, window_bounds = array<i64: 1, 128>}, {pipeline_mode = #tpu.pipeline_mode<synchronous>, transform_indices = @transform_5, window_bounds = array<i64: 128, 128>}, {transform_indices = @transform_6, window_bounds = array<i64: 16, 128>}]} {
    %c0 = arith.constant 0 : index
    %c0_0 = arith.constant 0 : index
    %0 = vector.load %arg1[%c0, %c0_0] : memref<16x128xbf16, #tpu.memory_space<vmem>>, vector<16x128xbf16>
    %c0_1 = arith.constant 0 : index
    %c0_2 = arith.constant 0 : index
    %1 = vector.load %arg2[%c0_1, %c0_2] : memref<128x128xbf16, #tpu.memory_space<vmem>>, vector<128x128xbf16>
    %c0_3 = arith.constant 0 : index
    %c0_4 = arith.constant 0 : index
    %2 = vector.load %arg3[%c0_3, %c0_4] : memref<1x128xf32, #tpu.memory_space<vmem>>, vector<1x128xf32>
    %cst = arith.constant dense<0.000000e+00> : vector<16x128xf32>
    %3 = tpu.matmul %0, %1, %cst {dimension_numbers = #tpu.dot_dimension_numbers<[1], [0], [0], [1], [0, 0, 1, 1], [], []>} : vector<16x128xbf16>, vector<128x128xbf16>, vector<16x128xf32> -> vector<16x128xf32>
    %4 = vector.broadcast %2 : vector<1x128xf32> to vector<16x128xf32>
    %5 = arith.addf %3, %4 : vector<16x128xf32>
    %cst_5 = arith.constant 0.000000e+00 : f32
    %6 = vector.broadcast %cst_5 : f32 to vector<16x128xf32>
    %7 = arith.maximumf %5, %6 : vector<16x128xf32>
    %8 = arith.truncf %7 : vector<16x128xf32> to vector<16x128xbf16>
    %c0_6 = arith.constant 0 : index
    %c0_7 = arith.constant 0 : index
    %9 = vector.load %arg4[%c0_6, %c0_7] : memref<128x128xbf16, #tpu.memory_space<vmem>>, vector<128x128xbf16>
    %c0_8 = arith.constant 0 : index
    %c0_9 = arith.constant 0 : index
    %10 = vector.load %arg5[%c0_8, %c0_9] : memref<1x128xf32, #tpu.memory_space<vmem>>, vector<1x128xf32>
    %cst_10 = arith.constant dense<0.000000e+00> : vector<16x128xf32>
    %11 = tpu.matmul %8, %9, %cst_10 {dimension_numbers = #tpu.dot_dimension_numbers<[1], [0], [0], [1], [0, 0, 1, 1], [], []>} : vector<16x128xbf16>, vector<128x128xbf16>, vector<16x128xf32> -> vector<16x128xf32>
    %12 = vector.broadcast %10 : vector<1x128xf32> to vector<16x128xf32>
    %13 = arith.addf %11, %12 : vector<16x128xf32>
    %cst_11 = arith.constant 0.000000e+00 : f32
    %14 = vector.broadcast %cst_11 : f32 to vector<16x128xf32>
    %15 = arith.maximumf %13, %14 : vector<16x128xf32>
    %16 = arith.truncf %15 : vector<16x128xf32> to vector<16x128xbf16>
    %c0_12 = arith.constant 0 : index
    %c0_13 = arith.constant 0 : index
    %17 = vector.load %arg6[%c0_12, %c0_13] : memref<128x128xbf16, #tpu.memory_space<vmem>>, vector<128x128xbf16>
    %cst_14 = arith.constant dense<0.000000e+00> : vector<16x128xf32>
    %18 = tpu.matmul %16, %17, %cst_14 {dimension_numbers = #tpu.dot_dimension_numbers<[1], [0], [0], [1], [0, 0, 1, 1], [], []>} : vector<16x128xbf16>, vector<128x128xbf16>, vector<16x128xf32> -> vector<16x128xf32>
    %c0_15 = arith.constant 0 : index
    %c0_16 = arith.constant 0 : index
    %19 = vector.load %arg7[%c0_15, %c0_16] : memref<16x128xf32, #tpu.memory_space<vmem>>, vector<16x128xf32>
    tpu.vector_store %arg7[%c0_15, %c0_16], %18 {strides = array<i32>} : memref<16x128xf32, #tpu.memory_space<vmem>>, vector<16x128xf32>,
    return
  }
  func.func @transform_0(%arg0: i32) -> (i32, i32) {
    %c0_i32 = arith.constant 0 : i32
    %c0_i32_0 = arith.constant 0 : i32
    return %arg0, %c0_i32 : i32, i32
  }
  func.func @transform_1(%arg0: i32) -> (i32, i32) {
    %c0_i32 = arith.constant 0 : i32
    %c0_i32_0 = arith.constant 0 : i32
    %c0_i32_1 = arith.constant 0 : i32
    return %c0_i32, %c0_i32_0 : i32, i32
  }
  func.func @transform_2(%arg0: i32) -> (i32, i32) {
    %c0_i32 = arith.constant 0 : i32
    %c0_i32_0 = arith.constant 0 : i32
    %c0_i32_1 = arith.constant 0 : i32
    return %c0_i32, %c0_i32_0 : i32, i32
  }
  func.func @transform_3(%arg0: i32) -> (i32, i32) {
    %c0_i32 = arith.constant 0 : i32
    %c0_i32_0 = arith.constant 0 : i32
    %c0_i32_1 = arith.constant 0 : i32
    return %c0_i32, %c0_i32_0 : i32, i32
  }
  func.func @transform_4(%arg0: i32) -> (i32, i32) {
    %c0_i32 = arith.constant 0 : i32
    %c0_i32_0 = arith.constant 0 : i32
    %c0_i32_1 = arith.constant 0 : i32
    return %c0_i32, %c0_i32_0 : i32, i32
  }
  func.func @transform_5(%arg0: i32) -> (i32, i32) {
    %c0_i32 = arith.constant 0 : i32
    %c0_i32_0 = arith.constant 0 : i32
    %c0_i32_1 = arith.constant 0 : i32
    return %c0_i32, %c0_i32_0 : i32, i32
  }
  func.func @transform_6(%arg0: i32) -> (i32, i32) {
    %c0_i32 = arith.constant 0 : i32
    %c0_i32_0 = arith.constant 0 : i32
    return %arg0, %c0_i32 : i32, i32
  }
}

</mosaic_0001>

<llo_original>
// kernel: tpu_custom_call.1
$region0: #{tpu_custom_call.1}
  #allocation0 [shape = 'u32[]', space=smem, size = 0x4, offset = 0x4, fixed_abs, tag = 'smem constant byte address 0x4 - core index']
  #allocation1 [shape = 'u32[72,128]{1,0:T(1,128)}', space=vmem, size = 0x9000, scoped, tag = 'internal scratch']
  %s0 = inlined_call_operand.hbm [shape: bf16[16,128], index: 0, kind: input, shape index: {}]
  %s1 = inlined_call_operand.hbm [shape: bf16[128,128], index: 1, kind: input, shape index: {}]
  %s2 = inlined_call_operand.vmem [shape: f32[1,128], index: 2, kind: input, shape index: {}]
  %s3 = inlined_call_operand.hbm [shape: bf16[128,128], index: 3, kind: input, shape index: {}]
  %s4 = inlined_call_operand.vmem [shape: f32[1,128], index: 4, kind: input, shape index: {}]
  %s5 = inlined_call_operand.hbm [shape: bf16[128,128], index: 5, kind: input, shape index: {}]
  %s6 = inlined_call_operand.hbm [shape: f32[16,128], index: 6, kind: output, shape index: {}]
  %s7 = sld [smem:[#allocation0]]
  $region50: #{tpu_custom_call.1} parent=0
    _
  %s9 = ssub.s32 1, %s7
  %s10 = scalar_select 0, %s9, %s7
  $region1: #{tpu_custom_call.1} parent=0
    #allocation2 [shape = 'u8[4096]{0}', space=vmem, size = 0x1000, scoped, tag = 'input window, operand 0, single buffered']
    #allocation3 [shape = 's32[1]{0}', space=sflag, size = 0x4, scoped, tag = 'scoped memory for tpu_custom_call.1']
    #allocation4 [shape = 's32[1]{0}', space=sflag, size = 0x4, scoped, tag = 'scoped memory for tpu_custom_call.1']
    #allocation5 [shape = 'u8[32768]{0}', space=vmem, size = 0x8000, scoped, tag = 'input window, operand 1, single buffered']
    #allocation6 [shape = 's32[1]{0}', space=sflag, size = 0x4, scoped, tag = 'scoped memory for tpu_custom_call.1']
    #allocation7 [shape = 'u8[32768]{0}', space=vmem, size = 0x8000, scoped, tag = 'input window, operand 3, single buffered']
    #allocation8 [shape = 'u8[32768]{0}', space=vmem, size = 0x8000, scoped, tag = 'input window, operand 5, single buffered']
    #allocation9 [shape = 's32[1]{0}', space=sflag, size = 0x4, scoped, tag = 'scoped memory for tpu_custom_call.1']
    #allocation10 [shape = 'u8[8192]{0}', space=vmem, size = 0x2000, scoped, tag = 'output window, operand 0, single buffered']
    %11 = vsyncpa [#allocation3], 0
    %12 = vsyncpa [#allocation6], 0
    %13 = vsyncpa [#allocation9], 0
    %14 = vsyncpa [#allocation4], 0
    // Predicated region
    $region2: #{tpu_custom_call.1} parent=1 // pred_check
      _
    $region3: #{tpu_custom_call.1} parent=1 // pred_check_branch
      %16 = sbr.rel (0) target = $region5
    $region4: #{tpu_custom_call.1} parent=1 // pred_region
      %18 = vsyncadd [#allocation3], 0
      %s19 = sshll.u32 %s0, 4
      %s20 = int_to_ptr.hbm [resolvable:$true] %s19
      %s21 = sshll.u32 [#allocation2], 4
      %s22 = int_to_ptr.vmem [resolvable:$true] %s21
      %27 = dma.hbm_to_vmem [thread:$0]  %s20, 128, %s22, [#allocation3], 64, 64, 4
    $region5: #{tpu_custom_call.1} parent=1 // pred_fallthru
      _
    // Predicated region
    $region6: #{tpu_custom_call.1} parent=1 // pred_check
      _
    $region7: #{tpu_custom_call.1} parent=1 // pred_check_branch
      %29 = sbr.rel (0) target = $region9
    $region8: #{tpu_custom_call.1} parent=1 // pred_region
      %31 = vsyncadd [#allocation6], 0
      %s32 = sshll.u32 %s1, 4
      %s33 = int_to_ptr.hbm [resolvable:$true] %s32
      %s34 = sshll.u32 [#allocation5], 4
      %s35 = int_to_ptr.vmem [resolvable:$true] %s34
      %40 = dma.hbm_to_vmem [thread:$0]  %s33, 1024, %s35, [#allocation6], 64, 64, 4
    $region9: #{tpu_custom_call.1} parent=1 // pred_fallthru
      _
    // Predicated region
    $region10: #{tpu_custom_call.1} parent=1 // pred_check
      _
    $region11: #{tpu_custom_call.1} parent=1 // pred_check_branch
      %42 = sbr.rel (0) target = $region13
    $region12: #{tpu_custom_call.1} parent=1 // pred_region
      _
    $region13: #{tpu_custom_call.1} parent=1 // pred_fallthru
      _
    // Predicated region
    $region14: #{tpu_custom_call.1} parent=1 // pred_check
      _
    $region15: #{tpu_custom_call.1} parent=1 // pred_check_branch
      %44 = sbr.rel (0) target = $region17
    $region16: #{tpu_custom_call.1} parent=1 // pred_region
      %46 = vsyncadd [#allocation6], 0
      %s47 = sshll.u32 %s3, 4
      %s48 = int_to_ptr.hbm [resolvable:$true] %s47
      %s49 = sshll.u32 [#allocation7], 4
      %s50 = int_to_ptr.vmem [resolvable:$true] %s49
      %55 = dma.hbm_to_vmem [thread:$0]  %s48, 1024, %s50, [#allocation6], 64, 64, 4
    $region17: #{tpu_custom_call.1} parent=1 // pred_fallthru
      _
    // Predicated region
    $region18: #{tpu_custom_call.1} parent=1 // pred_check
      _
    $region19: #{tpu_custom_call.1} parent=1 // pred_check_branch
      %57 = sbr.rel (0) target = $region21
    $region20: #{tpu_custom_call.1} parent=1 // pred_region
      _
    $region21: #{tpu_custom_call.1} parent=1 // pred_fallthru
      _
    // Predicated region
    $region22: #{tpu_custom_call.1} parent=1 // pred_check
      _
    $region23: #{tpu_custom_call.1} parent=1 // pred_check_branch
      %59 = sbr.rel (0) target = $region25
    $region24: #{tpu_custom_call.1} parent=1 // pred_region
      %61 = vsyncadd [#allocation9], 0
      %s62 = sshll.u32 %s5, 4
      %s63 = int_to_ptr.hbm [resolvable:$true] %s62
      %s64 = sshll.u32 [#allocation8], 4
      %s65 = int_to_ptr.vmem [resolvable:$true] %s64
      %70 = dma.hbm_to_vmem [thread:$0]  %s63, 1024, %s65, [#allocation9], 64, 64, 4
    $region25: #{tpu_custom_call.1} parent=1 // pred_fallthru
      _
    // Predicated region
    $region26: #{tpu_custom_call.1} parent=1 // pred_check
      _
    $region27: #{tpu_custom_call.1} parent=1 // pred_check_branch
      %72 = sbr.rel (0) target = $region29
    $region28: #{tpu_custom_call.1} parent=1 // pred_region
      %74 = dma.done [#allocation3], 128
    $region29: #{tpu_custom_call.1} parent=1 // pred_fallthru
      _
    // Predicated region
    $region30: #{tpu_custom_call.1} parent=1 // pred_check
      _
    $region31: #{tpu_custom_call.1} parent=1 // pred_check_branch
      %76 = sbr.rel (0) target = $region33
    $region32: #{tpu_custom_call.1} parent=1 // pred_region
      %78 = dma.done [#allocation6], 1024
    $region33: #{tpu_custom_call.1} parent=1 // pred_fallthru
      _
    // Predicated region
    $region34: #{tpu_custom_call.1} parent=1 // pred_check
      _
    $region35: #{tpu_custom_call.1} parent=1 // pred_check_branch
      %80 = sbr.rel (0) target = $region37
    $region36: #{tpu_custom_call.1} parent=1 // pred_region
      %82 = dma.done [#allocation6], 1024
    $region37: #{tpu_custom_call.1} parent=1 // pred_fallthru
      _
    // Predicated region
    $region38: #{tpu_custom_call.1} parent=1 // pred_check
      _
    $region39: #{tpu_custom_call.1} parent=1 // pred_check_branch
      %84 = sbr.rel (0) target = $region41
    $region40: #{tpu_custom_call.1} parent=1 // pred_region
      %86 = dma.done [#allocation9], 1024
    $region41: #{tpu_custom_call.1} parent=1 // pred_fallthru
      _
    %v87 = vld [vmem:[#allocation2] sm:$0xf]
    %v88 = vld [vmem:[#allocation2 + $0x4] sm:$0xf]
    %v89 = vld [vmem:[#allocation5] sm:$0xf]
    %v90 = vld [vmem:[#allocation5 + $0x4] sm:$0xf]
    %v91 = vld [vmem:[#allocation5 + $0x8] sm:$0xf]
    %v92 = vld [vmem:[#allocation5 + $0xc] sm:$0xf]
    %v93 = vld [vmem:[#allocation5 + $0x10] sm:$0xf]
    %v94 = vld [vmem:[#allocation5 + $0x14] sm:$0xf]
    %v95 = vld [vmem:[#allocation5 + $0x18] sm:$0xf]
    %v96 = vld [vmem:[#allocation5 + $0x1c] sm:$0xf]
    %v97 = vld [vmem:[#allocation5 + $0x20] sm:$0xf]
    %v98 = vld [vmem:[#allocation5 + $0x24] sm:$0xf]
    %v99 = vld [vmem:[#allocation5 + $0x28] sm:$0xf]
    %v100 = vld [vmem:[#allocation5 + $0x2c] sm:$0xf]
    %v101 = vld [vmem:[#allocation5 + $0x30] sm:$0xf]
    %v102 = vld [vmem:[#allocation5 + $0x34] sm:$0xf]
    %v103 = vld [vmem:[#allocation5 + $0x38] sm:$0xf]
    %v104 = vld [vmem:[#allocation5 + $0x3c] sm:$0xf]
    %v105 = vld [vmem:[%s2] sm:$0x1]
    %v107 = vperm.slane %v105, 0
    %v111 = vunpack.c.l.b16 %v87
    %v112 = vunpack.c.l.b16 %v88
    %v113 = vpack.c.b16 %v112, %v111
    %v131 = vunpack.c.l.b16 %v89
    %v132 = vunpack.c.l.b16 %v90
    %v133 = vunpack.c.l.b16 %v91
    %v134 = vunpack.c.l.b16 %v92
    %v135 = vunpack.c.l.b16 %v93
    %v136 = vunpack.c.l.b16 %v94
    %v137 = vunpack.c.l.b16 %v95
    %v138 = vunpack.c.l.b16 %v96
    %v139 = vunpack.c.l.b16 %v97
    %v140 = vunpack.c.l.b16 %v98
    %v141 = vunpack.c.l.b16 %v99
    %v142 = vunpack.c.l.b16 %v100
    %v143 = vunpack.c.l.b16 %v101
    %v144 = vunpack.c.l.b16 %v102
    %v145 = vunpack.c.l.b16 %v103
    %v146 = vunpack.c.l.b16 %v104
    %v147 = vpack.c.b16 %v132, %v131
    %v148 = vpack.c.b16 %v134, %v133
    %v149 = vpack.c.b16 %v136, %v135
    %v150 = vpack.c.b16 %v138, %v137
    %v151 = vpack.c.b16 %v140, %v139
    %v152 = vpack.c.b16 %v142, %v141
    %v153 = vpack.c.b16 %v144, %v143
    %v154 = vpack.c.b16 %v146, %v145
    %163 = vmatpush.bf16.msra.mxu0 %v154
    %164 = vmatpush.bf16.msra.mxu0 %v153
    %165 = vmatpush.bf16.msra.mxu0 %v152
    %166 = vmatpush.bf16.msra.mxu0 %v151
    %167 = vmatpush.bf16.msra.mxu0 %v150
    %168 = vmatpush.bf16.msra.mxu0 %v149
    %169 = vmatpush.bf16.msra.mxu0 %v148
    %170 = vmatpush.bf16.msra.mxu0 %v147
    %171 = vmatmul.bf16.gmra.mxu0 %v113
    %v172 = vpop.f32.mrf.mxu0
    %v173 = vadd.f32 %v107, %v172
    %v174 = vpop.f32.mrf.mxu0
    %v175 = vadd.f32 %v107, %v174
    %176 = vdwg.mxu0
    %v177 = vmax.f32 %v173, 0.0
    %v178 = vmax.f32 %v175, 0.0
    %v179 = vpack.c.bf16 %v178, %v177
    %v180 = vld [vmem:[#allocation7] sm:$0xf]
    %v181 = vld [vmem:[#allocation7 + $0x4] sm:$0xf]
    %v182 = vld [vmem:[#allocation7 + $0x8] sm:$0xf]
    %v183 = vld [vmem:[#allocation7 + $0xc] sm:$0xf]
    %v184 = vld [vmem:[#allocation7 + $0x10] sm:$0xf]
    %v185 = vld [vmem:[#allocation7 + $0x14] sm:$0xf]
    %v186 = vld [vmem:[#allocation7 + $0x18] sm:$0xf]
    %v187 = vld [vmem:[#allocation7 + $0x1c] sm:$0xf]
    %v188 = vld [vmem:[#allocation7 + $0x20] sm:$0xf]
    %v189 = vld [vmem:[#allocation7 + $0x24] sm:$0xf]
    %v190 = vld [vmem:[#allocation7 + $0x28] sm:$0xf]
    %v191 = vld [vmem:[#allocation7 + $0x2c] sm:$0xf]
    %v192 = vld [vmem:[#allocation7 + $0x30] sm:$0xf]
    %v193 = vld [vmem:[#allocation7 + $0x34] sm:$0xf]
    %v194 = vld [vmem:[#allocation7 + $0x38] sm:$0xf]
    %v195 = vld [vmem:[#allocation7 + $0x3c] sm:$0xf]
    %v196 = vld [vmem:[%s4] sm:$0x1]
    %v198 = vperm.slane %v196, 0
    %v216 = vunpack.c.l.b16 %v180
    %v217 = vunpack.c.l.b16 %v181
    %v218 = vunpack.c.l.b16 %v182
    %v219 = vunpack.c.l.b16 %v183
    %v220 = vunpack.c.l.b16 %v184
    %v221 = vunpack.c.l.b16 %v185
    %v222 = vunpack.c.l.b16 %v186
    %v223 = vunpack.c.l.b16 %v187
    %v224 = vunpack.c.l.b16 %v188
    %v225 = vunpack.c.l.b16 %v189
    %v226 = vunpack.c.l.b16 %v190
    %v227 = vunpack.c.l.b16 %v191
    %v228 = vunpack.c.l.b16 %v192
    %v229 = vunpack.c.l.b16 %v193
    %v230 = vunpack.c.l.b16 %v194
    %v231 = vunpack.c.l.b16 %v195
    %v232 = vpack.c.b16 %v217, %v216
    %v233 = vpack.c.b16 %v219, %v218
    %v234 = vpack.c.b16 %v221, %v220
    %v235 = vpack.c.b16 %v223, %v222
    %v236 = vpack.c.b16 %v225, %v224
    %v237 = vpack.c.b16 %v227, %v226
    %v238 = vpack.c.b16 %v229, %v228
    %v239 = vpack.c.b16 %v231, %v230
    %248 = vmatpush.bf16.msra.mxu0 %v239
    %249 = vmatpush.bf16.msra.mxu0 %v238
    %250 = vmatpush.bf16.msra.mxu0 %v237
    %251 = vmatpush.bf16.msra.mxu0 %v236
    %252 = vmatpush.bf16.msra.mxu0 %v235
    %253 = vmatpush.bf16.msra.mxu0 %v234
    %254 = vmatpush.bf16.msra.mxu0 %v233
    %255 = vmatpush.bf16.msra.mxu0 %v232
    %256 = vmatmul.bf16.gmra.mxu0 %v179
    %v257 = vpop.f32.mrf.mxu0
    %v258 = vadd.f32 %v198, %v257
    %v259 = vpop.f32.mrf.mxu0
    %v260 = vadd.f32 %v198, %v259
    %261 = vdwg.mxu0
    %v262 = vmax.f32 %v258, 0.0
    %v263 = vmax.f32 %v260, 0.0
    %v264 = vpack.c.bf16 %v263, %v262
    %v265 = vld [vmem:[#allocation8] sm:$0xf]
    %v266 = vld [vmem:[#allocation8 + $0x4] sm:$0xf]
    %v267 = vld [vmem:[#allocation8 + $0x8] sm:$0xf]
    %v268 = vld [vmem:[#allocation8 + $0xc] sm:$0xf]
    %v269 = vld [vmem:[#allocation8 + $0x10] sm:$0xf]
    %v270 = vld [vmem:[#allocation8 + $0x14] sm:$0xf]
    %v271 = vld [vmem:[#allocation8 + $0x18] sm:$0xf]
    %v272 = vld [vmem:[#allocation8 + $0x1c] sm:$0xf]
    %v273 = vld [vmem:[#allocation8 + $0x20] sm:$0xf]
    %v274 = vld [vmem:[#allocation8 + $0x24] sm:$0xf]
    %v275 = vld [vmem:[#allocation8 + $0x28] sm:$0xf]
    %v276 = vld [vmem:[#allocation8 + $0x2c] sm:$0xf]
    %v277 = vld [vmem:[#allocation8 + $0x30] sm:$0xf]
    %v278 = vld [vmem:[#allocation8 + $0x34] sm:$0xf]
    %v279 = vld [vmem:[#allocation8 + $0x38] sm:$0xf]
    %v280 = vld [vmem:[#allocation8 + $0x3c] sm:$0xf]
    %v297 = vunpack.c.l.b16 %v265
    %v298 = vunpack.c.l.b16 %v266
    %v299 = vunpack.c.l.b16 %v267
    %v300 = vunpack.c.l.b16 %v268
    %v301 = vunpack.c.l.b16 %v269
    %v302 = vunpack.c.l.b16 %v270
    %v303 = vunpack.c.l.b16 %v271
    %v304 = vunpack.c.l.b16 %v272
    %v305 = vunpack.c.l.b16 %v273
    %v306 = vunpack.c.l.b16 %v274
    %v307 = vunpack.c.l.b16 %v275
    %v308 = vunpack.c.l.b16 %v276
    %v309 = vunpack.c.l.b16 %v277
    %v310 = vunpack.c.l.b16 %v278
    %v311 = vunpack.c.l.b16 %v279
    %v312 = vunpack.c.l.b16 %v280
    %v313 = vpack.c.b16 %v298, %v297
    %v314 = vpack.c.b16 %v300, %v299
    %v315 = vpack.c.b16 %v302, %v301
    %v316 = vpack.c.b16 %v304, %v303
    %v317 = vpack.c.b16 %v306, %v305
    %v318 = vpack.c.b16 %v308, %v307
    %v319 = vpack.c.b16 %v310, %v309
    %v320 = vpack.c.b16 %v312, %v311
    %329 = vmatpush.bf16.msra.mxu0 %v320
    %330 = vmatpush.bf16.msra.mxu0 %v319
    %331 = vmatpush.bf16.msra.mxu0 %v318
    %332 = vmatpush.bf16.msra.mxu0 %v317
    %333 = vmatpush.bf16.msra.mxu0 %v316
    %334 = vmatpush.bf16.msra.mxu0 %v315
    %335 = vmatpush.bf16.msra.mxu0 %v314
    %336 = vmatpush.bf16.msra.mxu0 %v313
    %337 = vmatmul.bf16.gmra.mxu0 %v264
    %v338 = vpop.f32.mrf.mxu0
    %v339 = vadd.f32 0.0, %v338
    %v340 = vpop.f32.mrf.mxu0
    %v341 = vadd.f32 0.0, %v340
    %342 = vdwg.mxu0
    %343 = vst [vmem:[#allocation10] sm:$0xff] %v339
    %344 = vst [vmem:[#allocation10 + $0x8] sm:$0xff] %v341
    // Predicated region
    $region42: #{tpu_custom_call.1} parent=1 // pred_check
      _
    $region43: #{tpu_custom_call.1} parent=1 // pred_check_branch
      %346 = sbr.rel (0) target = $region45
    $region44: #{tpu_custom_call.1} parent=1 // pred_region
      %348 = vsyncadd [#allocation4], 0
      %s349 = sshll.u32 [#allocation10], 4
      %s350 = int_to_ptr.vmem [resolvable:$true] %s349
      %s351 = sshll.u32 %s6, 4
      %s352 = int_to_ptr.hbm [resolvable:$true] %s351
      %357 = dma.vmem_to_hbm [thread:$0]  %s350, 256, %s352, [#allocation4], 128, 128, 8
    $region45: #{tpu_custom_call.1} parent=1 // pred_fallthru
      _
    // Predicated region
    $region46: #{tpu_custom_call.1} parent=1 // pred_check
      _
    $region47: #{tpu_custom_call.1} parent=1 // pred_check_branch
      %359 = sbr.rel (0) target = $region49
    $region48: #{tpu_custom_call.1} parent=1 // pred_region
      %361 = dma.done [#allocation4], 256
    $region49: #{tpu_custom_call.1} parent=1 // pred_fallthru
      _
    %362 = vsyncpa [#allocation3], 1
    %363 = vsyncpa [#allocation6], 1
    %364 = vsyncpa [#allocation9], 1
    %365 = vsyncpa [#allocation4], 1

</llo_original>
